<compile_context>
chip_gen: v5e
topology: v5e:2x2
jax: 0.10.0
libtpu: 0.0.40
codegen_flags: <defaults>
</compile_context>

<pallas_src>
from functools import partial

import jax
import jax.numpy as jnp
from jax import lax
from jax.experimental import pallas as pl
from jax.experimental.pallas import tpu as pltpu

LANE = 128
SUBLANE = 8


def _round_up(x, m):
    return (x + m - 1) // m * m


def _padded_tile_bytes(rows, cols, itemsize):
    # VMEM layout pads the last two dims to (8, 128).
    return _round_up(rows, SUBLANE) * _round_up(cols, LANE) * itemsize


def _pick_batch_tiling(batch, *, max_tile=2048, max_pad_frac=0.10):
    """Choose (tile_b, padded_batch).

    Goals (perf review): (a) never blow the batch up ~2x just to reach a fixed
    tile, (b) prefer big tiles (per-grid-step overhead ~0.35us), (c) when the
    batch allows it, use >=2 grid steps so the 'parallel' batch axis can shard
    across v7x's two TensorCores.
    """
    b8 = _round_up(max(batch, 1), SUBLANE)
    max_tile = _round_up(max_tile, SUBLANE)
    cands = {min(b8, max_tile)}                                   # one big tile
    cands.add(min(_round_up(pl.cdiv(b8, 2), SUBLANE), max_tile))  # ~2-step split
    t = SUBLANE
    while t <= min(b8, max_tile):
        cands.add(t)
        t *= 2
    pad_budget = max(int(max_pad_frac * batch), SUBLANE)

    def goodness(tile):
        b_pad = _round_up(b8, tile)
        pad_ok = (b_pad - batch) <= pad_budget
        two_steps = (b_pad // tile) >= 2
        return (pad_ok, two_steps, tile)          # lexicographic preference

    tile_b = max(cands, key=goodness)
    return tile_b, _round_up(b8, tile_b)


def fuse_latent_encoder_params(w_mean, b_mean, w_var, b_var, *, dtype=None):
    """Pack mean|var weights/biases contiguously into one lane-dense slab.

    Call ONCE at parameter-init time (the concat/pad re-reads and re-writes
    the weights in HBM) and reuse the result every forward.

    dtype: explicit parameter precision for the kernel (default: keep the
    parameters' own dtype; pass jnp.bfloat16 to trade precision for ~2x less
    weight HBM traffic on v6e/v7x).
    """
    if dtype is None:
        dtype = jnp.result_type(w_mean.dtype, w_var.dtype)
    in_size, out_size = w_mean.shape
    assert w_var.shape == (in_size, out_size)
    fused_w = _round_up(2 * out_size, LANE)

    w_cat = jnp.concatenate([w_mean.astype(dtype), w_var.astype(dtype)], axis=1)
    b_cat = jnp.concatenate([b_mean.astype(dtype), b_var.astype(dtype)])
    pad = fused_w - 2 * out_size
    if pad:
        w_cat = jnp.pad(w_cat, ((0, 0), (0, pad)))
        b_cat = jnp.pad(b_cat, ((0, pad),))
    return w_cat, b_cat.reshape(1, fused_w), out_size


def latent_encoder_kernel(x_ref, w_ref, b_ref, out_ref, *, out_size):
    # One fused GEMM on the MXU: [tile_b, K] @ [K, fused_w], f32 accumulate.
    y = jnp.dot(x_ref[...], w_ref[...],
                preferred_element_type=jnp.float32)
    y = y + b_ref[...].astype(jnp.float32)

    # Branch-free numerically-stable softplus on the whole slab:
    #   softplus(z) = max(z, 0) + log1p(exp(-|z|))
    # exp/log1p go to the EUP (separate bundle slot), so computing it on the
    # mean/padding lanes too is effectively free.
    sp = jnp.maximum(y, 0.0) + jnp.log1p(jnp.exp(-jnp.abs(y)))

    # Per-lane blend: lanes [0, out_size) are the mean (identity), lanes
    # [out_size, 2*out_size) are var = 0.01 * softplus; trailing padding lanes
    # are discarded by the wrapper.
    col = lax.broadcasted_iota(jnp.int32, y.shape, 1)
    out = jnp.where(col < out_size, y, 0.01 * sp)

    # Single lane-dense, 128-aligned, unmasked full-width store.
    out_ref[...] = out.astype(out_ref.dtype)


@partial(jax.jit, static_argnames=("out_size", "max_tile_b", "out_dtype"))
def latent_variable_encoder_fused(x, w_fused, b_fused, *, out_size,
                                  max_tile_b=2048, out_dtype=None):
    """x: [B, input_size]; (w_fused, b_fused, out_size) from
    fuse_latent_encoder_params.  Returns (mean, var) matching the PyTorch
    module's forward().  NOTE: if out_dtype is bf16, the 0.01-scaled var loses
    relative precision -- keep f32 outputs (the default for f32 x) if var
    feeds a log-likelihood."""
    B, in_size = x.shape
    fused_w = w_fused.shape[1]
    out_dtype = x.dtype if out_dtype is None else out_dtype

    tile_b, b_pad = _pick_batch_tiling(B, max_tile=max_tile_b)
    x_pad = x if b_pad == B else jnp.pad(x, ((0, b_pad - B), (0, 0)))
    grid = (b_pad // tile_b,)

    x_isz = jnp.dtype(x.dtype).itemsize
    w_isz = jnp.dtype(w_fused.dtype).itemsize
    o_isz = jnp.dtype(out_dtype).itemsize

    # VMEM budget: x / out tiles are double-buffered by the pipeline; the
    # constant-index weight & bias blocks also get 2 buffers by default.
    vmem_need = (
        2 * _padded_tile_bytes(tile_b, in_size, x_isz)
        + 2 * _padded_tile_bytes(tile_b, fused_w, o_isz)
        + 2 * _padded_tile_bytes(in_size, fused_w, w_isz)
        + 2 * _padded_tile_bytes(1, fused_w, w_isz)
    )
    vmem_limit = int(min(max(vmem_need * 3 // 2, 16 << 20), 64 << 20))

    cost = pl.CostEstimate(
        flops=2 * b_pad * in_size * fused_w + 4 * b_pad * fused_w,
        transcendentals=2 * b_pad * fused_w,   # exp + log1p per slab element
        bytes_accessed=(x_pad.size * x_isz
                        + w_fused.size * w_isz
                        + b_fused.size * w_isz
                        + b_pad * fused_w * o_isz),
    )

    out = pl.pallas_call(
        partial(latent_encoder_kernel, out_size=out_size),
        out_shape=jax.ShapeDtypeStruct((b_pad, fused_w), out_dtype),
        grid_spec=pltpu.PrefetchScalarGridSpec(
            num_scalar_prefetch=0,
            grid=grid,
            in_specs=[
                # x: tiled over the batch, double-buffered by the pipeline.
                pl.BlockSpec((tile_b, in_size), lambda i: (i, 0)),
                # fused weights / bias: constant block -> VMEM-resident.
                pl.BlockSpec((in_size, fused_w), lambda i: (0, 0)),
                pl.BlockSpec((1, fused_w), lambda i: (0, 0)),
            ],
            out_specs=pl.BlockSpec((tile_b, fused_w), lambda i: (i, 0)),
        ),
        compiler_params=pltpu.CompilerParams(
            dimension_semantics=("parallel",),
            vmem_limit_bytes=vmem_limit,
        ),
        cost_estimate=cost,
    )(x_pad, w_fused, b_fused)

    mean = out[:B, :out_size]
    var = out[:B, out_size:2 * out_size]
    return mean, var


def latent_variable_encoder(x, w_mean, b_mean, w_var, b_var, **kwargs):
    """One-shot convenience wrapper (re-fuses the params every call; prefer
    fuse_latent_encoder_params + latent_variable_encoder_fused in hot loops)."""
    w_fused, b_fused, out_size = fuse_latent_encoder_params(
        w_mean, b_mean, w_var, b_var)
    return latent_variable_encoder_fused(x, w_fused, b_fused,
                                         out_size=out_size, **kwargs)


if __name__ == "__main__":
    # Small shapes consistent with the module: Linear(input_size -> output_size).
    B, input_size, output_size = 8, 32, 16

    key = jax.random.PRNGKey(0)
    kx, kwm, kbm, kwv, kbv = jax.random.split(key, 5)

    x = jax.random.normal(kx, (B, input_size), dtype=jnp.float32)

    # PyTorch nn.Linear init: U(-1/sqrt(in), 1/sqrt(in)); weights stored as
    # [input_size, output_size] (transposed vs nn.Linear.weight).
    bound = 1.0 / float(jnp.sqrt(jnp.float32(input_size)))
    w_mean = jax.random.uniform(kwm, (input_size, output_size), jnp.float32, -bound, bound)
    b_mean = jax.random.uniform(kbm, (output_size,), jnp.float32, -bound, bound)
    w_var = jax.random.uniform(kwv, (input_size, output_size), jnp.float32, -bound, bound)
    b_var = jax.random.uniform(kbv, (output_size,), jnp.float32, -bound, bound)

    # Fuse the parameters once (init-time), reuse every forward.
    w_fused, b_fused, out_size = fuse_latent_encoder_params(
        w_mean, b_mean, w_var, b_var)

    mean, var = latent_variable_encoder_fused(x, w_fused, b_fused, out_size=out_size)
    jax.block_until_ready((mean, var))

    # Reference check in plain JAX.
    ref_mean = x @ w_mean + b_mean
    ref_var = jax.nn.softplus(x @ w_var + b_var) * 0.01
    assert mean.shape == (B, output_size) and var.shape == (B, output_size)
    assert jnp.allclose(mean, ref_mean, atol=1e-5, rtol=1e-5)
    assert jnp.allclose(var, ref_var, atol=1e-6, rtol=1e-5)
    assert bool(jnp.all(var > 0))

    print("KERNEL_OK")
</pallas_src>

<mosaic_0001>
module attributes {stable_mosaic.version = 11 : i64} {
  func.func @latent_encoder_kernel(%arg0: i32, %arg1: memref<8x32xf32, #tpu.memory_space<vmem>>, %arg2: memref<32x128xf32, #tpu.memory_space<vmem>>, %arg3: memref<1x128xf32, #tpu.memory_space<vmem>>, %arg4: memref<8x128xf32, #tpu.memory_space<vmem>>) attributes {dimension_semantics = [#tpu.dimension_semantics<parallel>], iteration_bounds = array<i64: 1>, scalar_prefetch = 0 : i64, scratch_operands = 0 : i64, tpu.core_type = #tpu.core_type<tc>, window_params = [{transform_indices = @transform_0, window_bounds = array<i64: 8, 32>}, {pipeline_mode = #tpu.pipeline_mode<synchronous>, transform_indices = @transform_1, window_bounds = array<i64: 32, 128>}, {pipeline_mode = #tpu.pipeline_mode<synchronous>, transform_indices = @transform_2, window_bounds = array<i64: 1, 128>}, {transform_indices = @transform_3, window_bounds = array<i64: 8, 128>}]} {
    %c0 = arith.constant 0 : index
    %c0_0 = arith.constant 0 : index
    %0 = vector.load %arg1[%c0, %c0_0] : memref<8x32xf32, #tpu.memory_space<vmem>>, vector<8x32xf32>
    %c0_1 = arith.constant 0 : index
    %c0_2 = arith.constant 0 : index
    %1 = vector.load %arg2[%c0_1, %c0_2] : memref<32x128xf32, #tpu.memory_space<vmem>>, vector<32x128xf32>
    %cst = arith.constant dense<0.000000e+00> : vector<8x128xf32>
    %2 = tpu.matmul %0, %1, %cst {dimension_numbers = #tpu.dot_dimension_numbers<[1], [0], [0], [1], [0, 0, 1, 1], [], []>} : vector<8x32xf32>, vector<32x128xf32>, vector<8x128xf32> -> vector<8x128xf32>
    %c0_3 = arith.constant 0 : index
    %c0_4 = arith.constant 0 : index
    %3 = vector.load %arg3[%c0_3, %c0_4] : memref<1x128xf32, #tpu.memory_space<vmem>>, vector<1x128xf32>
    %4 = vector.broadcast %3 : vector<1x128xf32> to vector<8x128xf32>
    %5 = arith.addf %2, %4 : vector<8x128xf32>
    %cst_5 = arith.constant 0.000000e+00 : f32
    %6 = vector.broadcast %cst_5 : f32 to vector<8x128xf32>
    %7 = arith.maximumf %5, %6 : vector<8x128xf32>
    %8 = math.absf %5 : vector<8x128xf32>
    %cst_6 = arith.constant 0.000000e+00 : f32
    %9 = vector.broadcast %cst_6 : f32 to vector<8x128xf32>
    %10 = arith.subf %9, %8 : vector<8x128xf32>
    %11 = math.exp %10 : vector<8x128xf32>
    %12 = math.log1p %11 : vector<8x128xf32>
    %13 = arith.addf %7, %12 : vector<8x128xf32>
    %14 = tpu.iota {dimensions = array<i32: 1>} : vector<8x128xi32>
    %c16_i32 = arith.constant 16 : i32
    %15 = vector.broadcast %c16_i32 : i32 to vector<8x128xi32>
    %16 = arith.cmpi slt, %14, %15 : vector<8x128xi32>
    %cst_7 = arith.constant 0.00999999977 : f32
    %17 = vector.broadcast %cst_7 : f32 to vector<8x128xf32>
    %18 = arith.mulf %17, %13 : vector<8x128xf32>
    %19 = arith.select %16, %5, %18 : vector<8x128xi1>, vector<8x128xf32>
    %c0_8 = arith.constant 0 : index
    %c0_9 = arith.constant 0 : index
    %20 = vector.load %arg4[%c0_8, %c0_9] : memref<8x128xf32, #tpu.memory_space<vmem>>, vector<8x128xf32>
    tpu.vector_store %arg4[%c0_8, %c0_9], %19 {strides = array<i32>} : memref<8x128xf32, #tpu.memory_space<vmem>>, vector<8x128xf32>,
    return
  }
  func.func @transform_0(%arg0: i32) -> (i32, i32) {
    %c0_i32 = arith.constant 0 : i32
    %c0_i32_0 = arith.constant 0 : i32
    return %arg0, %c0_i32 : i32, i32
  }
  func.func @transform_1(%arg0: i32) -> (i32, i32) {
    %c0_i32 = arith.constant 0 : i32
    %c0_i32_0 = arith.constant 0 : i32
    %c0_i32_1 = arith.constant 0 : i32
    return %c0_i32, %c0_i32_0 : i32, i32
  }
  func.func @transform_2(%arg0: i32) -> (i32, i32) {
    %c0_i32 = arith.constant 0 : i32
    %c0_i32_0 = arith.constant 0 : i32
    %c0_i32_1 = arith.constant 0 : i32
    return %c0_i32, %c0_i32_0 : i32, i32
  }
  func.func @transform_3(%arg0: i32) -> (i32, i32) {
    %c0_i32 = arith.constant 0 : i32
    %c0_i32_0 = arith.constant 0 : i32
    return %arg0, %c0_i32 : i32, i32
  }
}

</mosaic_0001>

<llo_original>
// kernel: latent_variable_encoder_fused.1
$region0: #{latent_variable_encoder_fused.1}
  #allocation0 [shape = 'u32[]', space=smem, size = 0x4, offset = 0x4, fixed_abs, tag = 'smem constant byte address 0x4 - core index']
  #allocation1 [shape = 'u32[72,128]{1,0:T(1,128)}', space=vmem, size = 0x9000, scoped, tag = 'internal scratch']
  %s0 = inlined_call_operand.hbm [shape: f32[8,32], index: 0, kind: input, shape index: {}]
  %s1 = inlined_call_operand.hbm [shape: f32[32,128], index: 1, kind: input, shape index: {}]
  %s2 = inlined_call_operand.vmem [shape: f32[1,128], index: 2, kind: input, shape index: {}]
  %s3 = inlined_call_operand.vmem [shape: f32[8,128], index: 3, kind: output, shape index: {}]
  %s4 = sld [smem:[#allocation0]]
  $region30: #{latent_variable_encoder_fused.1} parent=0
    _
  %s6 = ssub.s32 1, %s4
  %s7 = scalar_select 0, %s6, %s4
  $region1: #{latent_variable_encoder_fused.1} parent=0
    #allocation2 [shape = 'u8[4096]{0}', space=vmem, size = 0x1000, scoped, tag = 'input window, operand 0, single buffered']
    #allocation3 [shape = 's32[1]{0}', space=sflag, size = 0x4, scoped, tag = 'scoped memory for latent_variable_encoder_fused.1']
    #allocation4 [shape = 'u8[16384]{0}', space=vmem, size = 0x4000, scoped, tag = 'input window, operand 1, single buffered']
    #allocation5 [shape = 's32[1]{0}', space=sflag, size = 0x4, scoped, tag = 'scoped memory for latent_variable_encoder_fused.1']
    %8 = vsyncpa [#allocation3], 0
    %9 = vsyncpa [#allocation5], 0
    // Predicated region
    $region2: #{latent_variable_encoder_fused.1} parent=1 // pred_check
      _
    $region3: #{latent_variable_encoder_fused.1} parent=1 // pred_check_branch
      %11 = sbr.rel (0) target = $region5
    $region4: #{latent_variable_encoder_fused.1} parent=1 // pred_region
      %13 = vsyncadd [#allocation3], 0
      %s15 = sshll.u32 %s0, 4
      %s16 = int_to_ptr.hbm [resolvable:$true] %s15
      %s17 = sshll.u32 [#allocation2], 4
      %s18 = int_to_ptr.vmem [resolvable:$true] %s17
      %20 = dma.hbm_to_vmem [thread:$0]  %s16, 128, %s18, [#allocation3]
    $region5: #{latent_variable_encoder_fused.1} parent=1 // pred_fallthru
      _
    // Predicated region
    $region6: #{latent_variable_encoder_fused.1} parent=1 // pred_check
      _
    $region7: #{latent_variable_encoder_fused.1} parent=1 // pred_check_branch
      %22 = sbr.rel (0) target = $region9
    $region8: #{latent_variable_encoder_fused.1} parent=1 // pred_region
      %24 = vsyncadd [#allocation5], 0
      %s25 = sshll.u32 %s1, 4
      %s26 = int_to_ptr.hbm [resolvable:$true] %s25
      %s27 = sshll.u32 [#allocation4], 4
      %s28 = int_to_ptr.vmem [resolvable:$true] %s27
      %33 = dma.hbm_to_vmem [thread:$0]  %s26, 512, %s28, [#allocation5], 128, 128, 8
    $region9: #{latent_variable_encoder_fused.1} parent=1 // pred_fallthru
      _
    // Predicated region
    $region10: #{latent_variable_encoder_fused.1} parent=1 // pred_check
      _
    $region11: #{latent_variable_encoder_fused.1} parent=1 // pred_check_branch
      %35 = sbr.rel (0) target = $region13
    $region12: #{latent_variable_encoder_fused.1} parent=1 // pred_region
      _
    $region13: #{latent_variable_encoder_fused.1} parent=1 // pred_fallthru
      _
    // Predicated region
    $region14: #{latent_variable_encoder_fused.1} parent=1 // pred_check
      _
    $region15: #{latent_variable_encoder_fused.1} parent=1 // pred_check_branch
      %37 = sbr.rel (0) target = $region17
    $region16: #{latent_variable_encoder_fused.1} parent=1 // pred_region
      %39 = dma.done [#allocation3], 128
    $region17: #{latent_variable_encoder_fused.1} parent=1 // pred_fallthru
      _
    // Predicated region
    $region18: #{latent_variable_encoder_fused.1} parent=1 // pred_check
      _
    $region19: #{latent_variable_encoder_fused.1} parent=1 // pred_check_branch
      %41 = sbr.rel (0) target = $region21
    $region20: #{latent_variable_encoder_fused.1} parent=1 // pred_region
      %43 = dma.done [#allocation5], 512
    $region21: #{latent_variable_encoder_fused.1} parent=1 // pred_fallthru
      _
    %v44 = vld [vmem:[#allocation2] sm:$0xff]
    %v45 = vld [vmem:[#allocation4] sm:$0xff]
    %v46 = vld [vmem:[#allocation4 + $0x8] sm:$0xff]
    %v47 = vld [vmem:[#allocation4 + $0x10] sm:$0xff]
    %v48 = vld [vmem:[#allocation4 + $0x18] sm:$0xff]
    %v49 = vld [vmem:[%s2] sm:$0x1]
    %v51 = vperm.slane %v49, 0
    %vm53 = vcmask 261120
    %v55 = vsel %vm53, %v44, 0
    %57 = vmatpush.msra.mxu0 0.0
    %58 = vmatpush.msra.mxu0 0.0
    %59 = vmatpush.msra.mxu0 0.0
    %60 = vmatpush.msra.mxu0 0.0
    %61 = vmatpush.msra.mxu0 0.0
    %62 = vmatpush.msra.mxu0 0.0
    %63 = vmatpush.msra.mxu0 0.0
    %64 = vmatpush.msra.mxu0 0.0
    %65 = vmatpush.msra.mxu0 0.0
    %66 = vmatpush.msra.mxu0 0.0
    %67 = vmatpush.msra.mxu0 0.0
    %68 = vmatpush.msra.mxu0 0.0
    %69 = vmatpush.msra.mxu0 %v48
    %70 = vmatpush.msra.mxu0 %v47
    %71 = vmatpush.msra.mxu0 %v46
    %72 = vmatpush.msra.mxu0 %v45
    %73 = vmatmul.f32.gmra.mxu0 %v55
    %v74 = vpop.f32.mrf.mxu0
    %v75 = vadd.f32 %v51, %v74
    %76 = vdwg.mxu0
    %v77 = vmax.f32 %v75, 0.0
    %v78 = vand.u32 2147483647, %v75
    %v79 = vsub.f32 0.0, %v78
    %v80 = vmul.f32 %v79, 1.442695
    %v81 = vpow.pop %v80
    %v82 = vadd.f32 %v81, 1.0
    %v83 = vlog2.pop %v82
    %v84 = vmul.f32 %v83, 0.6931472
    %v85 = vmul.f32 -0.5, %v81
    %v86 = vadd.f32 %v85, 1.0
    %v87 = vmul.f32 %v86, %v81
    %v88 = vand.u32 2147483647, %v81
    %vm89 = vcmp.lt.f32.partialorder %v88, 0.0004427343
    %v90 = vsel %vm89, %v87, %v84
    %v91 = vadd.f32 %v77, %v90
    %v92 = vlaneseq
    %v93 = vand.u32 %v92, 127
    %vm94 = vcmp.lt.s32.totalorder %v93, 16
    %v95 = vmul.f32 %v91, 0.01
    %v96 = vsel %vm94, %v75, %v95
    %97 = vst [vmem:[%s3] sm:$0xff] %v96
    // Predicated region
    $region22: #{latent_variable_encoder_fused.1} parent=1 // pred_check
      _
    $region23: #{latent_variable_encoder_fused.1} parent=1 // pred_check_branch
      %99 = sbr.rel (0) target = $region25
    $region24: #{latent_variable_encoder_fused.1} parent=1 // pred_region
      _
    $region25: #{latent_variable_encoder_fused.1} parent=1 // pred_fallthru
      _
    // Predicated region
    $region26: #{latent_variable_encoder_fused.1} parent=1 // pred_check
      _
    $region27: #{latent_variable_encoder_fused.1} parent=1 // pred_check_branch
      %101 = sbr.rel (0) target = $region29
    $region28: #{latent_variable_encoder_fused.1} parent=1 // pred_region
      _
    $region29: #{latent_variable_encoder_fused.1} parent=1 // pred_fallthru
      _
    %102 = vsyncpa [#allocation3], 1
    %103 = vsyncpa [#allocation5], 1

</llo_original>
